<compile_context>
chip_gen: v6e
topology: v6e:2x2x1
jax: 0.10.0
libtpu: 0.0.40
codegen_flags: <defaults>
</compile_context>

<pallas_src>
import jax
import jax.numpy as jnp
from jax import lax
from jax.experimental import pallas as pl
from jax.experimental.pallas import tpu as pltpu


def _cdiv(a, b):
    return -(-a // b)


def _make_mask_params(key, B, Fdim, T, freq_mask_width, time_mask_width):
    """Per-batch (pos, len) int32 arrays of shape (B, 1, 1).

    Mirrors torch.randint semantics, except the position draw uses the
    *static* width upper bound (jit-safe; the stripe always fits inside the
    axis)."""
    k1, k2, k3, k4 = jax.random.split(key, 4)
    t_len = jax.random.randint(
        k1, (B, 1, 1), time_mask_width[0],
        max(time_mask_width[0] + 1, time_mask_width[1]), dtype=jnp.int32)
    t_hi = max(1, T - time_mask_width[1])
    t_pos = jax.random.randint(k2, (B, 1, 1), 0, t_hi, dtype=jnp.int32)

    f_len = jax.random.randint(
        k3, (B, 1, 1), freq_mask_width[0],
        max(freq_mask_width[0] + 1, freq_mask_width[1]), dtype=jnp.int32)
    f_hi = max(1, Fdim - freq_mask_width[1])
    f_pos = jax.random.randint(k4, (B, 1, 1), 0, f_hi, dtype=jnp.int32)
    return t_pos, t_len, f_pos, f_len


def _fbank_aug_kernel(tpos_ref, tlen_ref, fpos_ref, flen_ref, x_ref, o_ref):
    _, Fdim, Tt = x_ref.shape
    t_base = pl.program_id(1) * Tt        # element origin of this time tile

    # Hoisted, shared iotas (reduced shapes; only the final select is full-size).
    t_idx = lax.broadcasted_iota(jnp.int32, (1, 1, Tt), 2)
    f_idx = lax.broadcasted_iota(jnp.int32, (1, Fdim, 1), 1)

    t_pos = tpos_ref[...] - t_base        # (Bt, 1, 1), tile-local coordinates
    f_pos = fpos_ref[...]                 # (Bt, 1, 1)
    tmask = (t_idx >= t_pos) & (t_idx < t_pos + tlen_ref[...])   # (Bt, 1,   Tt)
    fmask = (f_idx >= f_pos) & (f_idx < f_pos + flen_ref[...])   # (Bt, Fdim, 1)
    mask = tmask | fmask                                         # (Bt, Fdim, Tt)

    x = x_ref[...]
    o_ref[...] = jnp.where(mask, jnp.zeros((), dtype=x.dtype), x)


def fbank_aug(x, key, freq_mask_width=(0, 8), time_mask_width=(0, 10)):
    """JAX/Pallas equivalent of FbankAug.forward (time mask then freq mask).

    Returns a new array (the PyTorch module masks in place via masked_fill_)."""
    B, Fdim, T = x.shape
    itemsize = jnp.dtype(x.dtype).itemsize

    t_pos, t_len, f_pos, f_len = _make_mask_params(
        key, B, Fdim, T, freq_mask_width, time_mask_width)

    # ---- tiling -------------------------------------------------------------
    # F is always the full dim.  T is the full dim when it fits comfortably in
    # VMEM, otherwise tiled at 2048 lanes (multiple of 128); the ragged last
    # time tile is clipped by Pallas - no padding of x, no over-padding past T.
    MAX_TILE_T = 2048
    tile_T = T if T <= MAX_TILE_T else MAX_TILE_T

    # Batch-tiled blocks of ~4 MiB (Bt capped at 64; no hard cap of 8).
    TARGET_BLOCK_BYTES = 4 << 20
    per_sample_bytes = Fdim * tile_T * itemsize
    Bt = int(max(1, min(B, 64, TARGET_BLOCK_BYTES // max(1, per_sample_bytes))))

    nb, nt = _cdiv(B, Bt), _cdiv(T, tile_T)
    # Keep >= 2 grid steps so the parallel grid can shard over both
    # TensorCores on v7x (megacore).
    if nb * nt < 2 and B >= 2:
        Bt = _cdiv(B, 2)
        nb = _cdiv(B, Bt)

    block = (Bt, Fdim, tile_T)
    # Param blocks: last two dims (1, 1) equal the full array dims, so any Bt
    # is legal and no padding of the parameter arrays is needed.
    param_spec = pl.BlockSpec((Bt, 1, 1), lambda bi, tj: (bi, 0, 0))
    data_spec = pl.BlockSpec(block, lambda bi, tj: (bi, 0, tj))

    return pl.pallas_call(
        _fbank_aug_kernel,
        out_shape=jax.ShapeDtypeStruct((B, Fdim, T), x.dtype),
        grid=(nb, nt),
        in_specs=[param_spec, param_spec, param_spec, param_spec, data_spec],
        out_specs=data_spec,
        compiler_params=pltpu.CompilerParams(
            dimension_semantics=("parallel", "parallel"),
            vmem_limit_bytes=48 << 20),
        cost_estimate=pl.CostEstimate(
            flops=0, transcendentals=0,
            bytes_accessed=2 * B * Fdim * T * itemsize),
    )(t_pos, t_len, f_pos, f_len, x)


def _reference(x, t_pos, t_len, f_pos, f_len):
    """Pure-JAX reference reproducing the PyTorch mask semantics."""
    B, Fdim, T = x.shape
    t_idx = jnp.arange(T)[None, None, :]
    f_idx = jnp.arange(Fdim)[None, :, None]
    tm = (t_idx >= t_pos) & (t_idx < t_pos + t_len)   # (B, 1, T)
    fm = (f_idx >= f_pos) & (f_idx < f_pos + f_len)   # (B, F, 1)
    return jnp.where(tm | fm, jnp.zeros((), x.dtype), x)


if __name__ == "__main__":
    root = jax.random.PRNGKey(0)
    # Second case exercises a non-128-multiple T and a partial (clipped) batch
    # block, i.e. the "no pad / no output slice" paths.
    for (B, Fdim, T) in [(2, 16, 32), (3, 16, 200)]:
        kx, kmask, root = jax.random.split(root, 3)
        x = jax.random.normal(kx, (B, Fdim, T), dtype=jnp.float32)

        out = jax.block_until_ready(jax.jit(fbank_aug)(x, kmask))

        t_pos, t_len, f_pos, f_len = _make_mask_params(
            kmask, B, Fdim, T, (0, 8), (0, 10))
        ref = _reference(x, t_pos, t_len, f_pos, f_len)

        assert out.shape == x.shape and out.dtype == x.dtype
        assert jnp.allclose(out, ref), f"Pallas mismatch vs reference at {(B, Fdim, T)}"
    print("KERNEL_OK")
</pallas_src>

<mosaic_0001>
module attributes {stable_mosaic.version = 11 : i64} {
  func.func @_fbank_aug_kernel(%arg0: i32, %arg1: i32, %arg2: memref<1x1x1xi32, #tpu.memory_space<vmem>>, %arg3: memref<1x1x1xi32, #tpu.memory_space<vmem>>, %arg4: memref<1x1x1xi32, #tpu.memory_space<vmem>>, %arg5: memref<1x1x1xi32, #tpu.memory_space<vmem>>, %arg6: memref<1x16x32xf32, #tpu.memory_space<vmem>>, %arg7: memref<1x16x32xf32, #tpu.memory_space<vmem>>) attributes {dimension_semantics = [#tpu.dimension_semantics<parallel>, #tpu.dimension_semantics<parallel>], iteration_bounds = array<i64: 2, 1>, scalar_prefetch = 0 : i64, scratch_operands = 0 : i64, tpu.core_type = #tpu.core_type<tc>, window_params = [{transform_indices = @transform_0, window_bounds = array<i64: 1, 1, 1>}, {transform_indices = @transform_1, window_bounds = array<i64: 1, 1, 1>}, {transform_indices = @transform_2, window_bounds = array<i64: 1, 1, 1>}, {transform_indices = @transform_3, window_bounds = array<i64: 1, 1, 1>}, {transform_indices = @transform_4, window_bounds = array<i64: 1, 16, 32>}, {transform_indices = @transform_5, window_bounds = array<i64: 1, 16, 32>}]} {
    %c32_i32 = arith.constant 32 : i32
    %0 = arith.muli %arg1, %c32_i32 : i32
    %1 = tpu.iota {dimensions = array<i32: 2>} : vector<1x1x32xi32>
    %2 = tpu.iota {dimensions = array<i32: 1>} : vector<1x16x1xi32>
    %c0 = arith.constant 0 : index
    %c0_0 = arith.constant 0 : index
    %c0_1 = arith.constant 0 : index
    %3 = vector.load %arg2[%c0, %c0_0, %c0_1] : memref<1x1x1xi32, #tpu.memory_space<vmem>>, vector<1x1x1xi32>
    %4 = vector.broadcast %0 : i32 to vector<1x1x1xi32>
    %5 = arith.subi %3, %4 : vector<1x1x1xi32>
    %c0_2 = arith.constant 0 : index
    %c0_3 = arith.constant 0 : index
    %c0_4 = arith.constant 0 : index
    %6 = vector.load %arg4[%c0_2, %c0_3, %c0_4] : memref<1x1x1xi32, #tpu.memory_space<vmem>>, vector<1x1x1xi32>
    %7 = vector.broadcast %5 : vector<1x1x1xi32> to vector<1x1x32xi32>
    %8 = arith.cmpi sge, %1, %7 : vector<1x1x32xi32>
    %c0_5 = arith.constant 0 : index
    %c0_6 = arith.constant 0 : index
    %c0_7 = arith.constant 0 : index
    %9 = vector.load %arg3[%c0_5, %c0_6, %c0_7] : memref<1x1x1xi32, #tpu.memory_space<vmem>>, vector<1x1x1xi32>
    %10 = arith.addi %5, %9 : vector<1x1x1xi32>
    %11 = vector.broadcast %10 : vector<1x1x1xi32> to vector<1x1x32xi32>
    %12 = arith.cmpi slt, %1, %11 : vector<1x1x32xi32>
    %13 = arith.andi %8, %12 : vector<1x1x32xi1>
    %14 = vector.broadcast %6 : vector<1x1x1xi32> to vector<1x16x1xi32>
    %15 = arith.cmpi sge, %2, %14 : vector<1x16x1xi32>
    %c0_8 = arith.constant 0 : index
    %c0_9 = arith.constant 0 : index
    %c0_10 = arith.constant 0 : index
    %16 = vector.load %arg5[%c0_8, %c0_9, %c0_10] : memref<1x1x1xi32, #tpu.memory_space<vmem>>, vector<1x1x1xi32>
    %17 = arith.addi %6, %16 : vector<1x1x1xi32>
    %18 = vector.broadcast %17 : vector<1x1x1xi32> to vector<1x16x1xi32>
    %19 = arith.cmpi slt, %2, %18 : vector<1x16x1xi32>
    %20 = arith.andi %15, %19 : vector<1x16x1xi1>
    %21 = vector.broadcast %13 : vector<1x1x32xi1> to vector<1x16x32xi1>
    %22 = vector.broadcast %20 : vector<1x16x1xi1> to vector<1x16x32xi1>
    %23 = arith.ori %21, %22 : vector<1x16x32xi1>
    %c0_11 = arith.constant 0 : index
    %c0_12 = arith.constant 0 : index
    %c0_13 = arith.constant 0 : index
    %24 = vector.load %arg6[%c0_11, %c0_12, %c0_13] : memref<1x16x32xf32, #tpu.memory_space<vmem>>, vector<1x16x32xf32>
    %cst = arith.constant 0.000000e+00 : f32
    %25 = vector.broadcast %cst : f32 to vector<1x16x32xf32>
    %26 = arith.select %23, %25, %24 : vector<1x16x32xi1>, vector<1x16x32xf32>
    %c0_14 = arith.constant 0 : index
    %c0_15 = arith.constant 0 : index
    %c0_16 = arith.constant 0 : index
    %27 = vector.load %arg7[%c0_14, %c0_15, %c0_16] : memref<1x16x32xf32, #tpu.memory_space<vmem>>, vector<1x16x32xf32>
    tpu.vector_store %arg7[%c0_14, %c0_15, %c0_16], %26 {strides = array<i32>} : memref<1x16x32xf32, #tpu.memory_space<vmem>>, vector<1x16x32xf32>,
    return
  }
  func.func @transform_0(%arg0: i32, %arg1: i32) -> (i32, i32, i32) {
    %c0_i32 = arith.constant 0 : i32
    %c0_i32_0 = arith.constant 0 : i32
    %c0_i32_1 = arith.constant 0 : i32
    return %arg0, %c0_i32, %c0_i32_0 : i32, i32, i32
  }
  func.func @transform_1(%arg0: i32, %arg1: i32) -> (i32, i32, i32) {
    %c0_i32 = arith.constant 0 : i32
    %c0_i32_0 = arith.constant 0 : i32
    %c0_i32_1 = arith.constant 0 : i32
    return %arg0, %c0_i32, %c0_i32_0 : i32, i32, i32
  }
  func.func @transform_2(%arg0: i32, %arg1: i32) -> (i32, i32, i32) {
    %c0_i32 = arith.constant 0 : i32
    %c0_i32_0 = arith.constant 0 : i32
    %c0_i32_1 = arith.constant 0 : i32
    return %arg0, %c0_i32, %c0_i32_0 : i32, i32, i32
  }
  func.func @transform_3(%arg0: i32, %arg1: i32) -> (i32, i32, i32) {
    %c0_i32 = arith.constant 0 : i32
    %c0_i32_0 = arith.constant 0 : i32
    %c0_i32_1 = arith.constant 0 : i32
    return %arg0, %c0_i32, %c0_i32_0 : i32, i32, i32
  }
  func.func @transform_4(%arg0: i32, %arg1: i32) -> (i32, i32, i32) {
    %c0_i32 = arith.constant 0 : i32
    %c0_i32_0 = arith.constant 0 : i32
    return %arg0, %c0_i32, %arg1 : i32, i32, i32
  }
  func.func @transform_5(%arg0: i32, %arg1: i32) -> (i32, i32, i32) {
    %c0_i32 = arith.constant 0 : i32
    %c0_i32_0 = arith.constant 0 : i32
    return %arg0, %c0_i32, %arg1 : i32, i32, i32
  }
}

</mosaic_0001>

<llo_original>
// kernel: fbank_aug.1
$region0: #{fbank_aug.1}
  #allocation0 [shape = 'u32[]', space=smem, size = 0x4, offset = 0x4, fixed_abs, tag = 'smem constant byte address 0x4 - core index']
  #allocation1 [shape = 'u32[144,128]{1,0:T(1,128)}', space=vmem, size = 0x12000, scoped, tag = 'internal scratch']
  %s0 = inlined_call_operand.vmem [shape: s32[2,1,1], index: 0, kind: input, shape index: {}]
  %s1 = inlined_call_operand.vmem [shape: s32[2,1,1], index: 1, kind: input, shape index: {}]
  %s2 = inlined_call_operand.vmem [shape: s32[2,1,1], index: 2, kind: input, shape index: {}]
  %s3 = inlined_call_operand.vmem [shape: s32[2,1,1], index: 3, kind: input, shape index: {}]
  %s4 = inlined_call_operand.vmem [shape: f32[2,16,32], index: 4, kind: input, shape index: {}]
  %s5 = inlined_call_operand.hbm [shape: f32[2,16,32], index: 5, kind: output, shape index: {}]
  %s6 = sld [smem:[#allocation0]]
  $region53: #{fbank_aug.1} parent=0
    _
  %s8 = ssub.s32 1, %s6
  %s9 = scalar_select 0, %s8, %s6
  $region1: #{fbank_aug.1} parent=0
    #allocation2 [shape = 'u8[16384]{0}', space=vmem, size = 0x4000, scoped, tag = 'output window, operand 0']
    #allocation3 [shape = 's32[2]{0}', space=sflag, size = 0x8, scoped, tag = 'scoped memory for fbank_aug.1']
    %10 = vsyncpa [#allocation3], 0
    %s11 = scalar_lea.sflag [#allocation3], 1
    %12 = vsyncpa %s11, 0
    loop: start=0, step=1, limit=4
    $region2: #{fbank_aug.1} parent=1 // loop_pre_header
      _
    $region3: #{fbank_aug.1} parent=1 // loop_header
      %s14 = sphi 0, %s18
      %p15 = scmp.ge.s32.totalorder %s14, 4
      %s21 = sphi 0, %s33
      %s22 = sphi 0, %s29
      %s23 = sphi 0, %s21
      %s24 = sphi 0, %s22
      %s25 = sphi 0, %s23
      %s26 = sphi 0, %s24
      %s36 = sphi 0, %s38
      %s39 = sphi 0, %s36
      %s40 = sphi 0, %s39
      %s56 = sphi 0, %s40
      %s62 = sphi 0, %s64
      %s65 = sphi 0, %s62
      %s66 = sphi 0, %s65
      %s82 = sphi 0, %s66
      %s88 = sphi 0, %s90
      %s91 = sphi 0, %s88
      %s92 = sphi 0, %s91
      %s108 = sphi 0, %s92
      %s114 = sphi 0, %s116
      %s117 = sphi 0, %s114
      %s118 = sphi 0, %s117
      %s134 = sphi 0, %s118
      %s142 = sphi 0, %s144
      %s145 = sphi 0, %s142
      %s146 = sphi 0, %s145
      %s162 = sphi 0, %s146
      %s170 = sphi 0, %s172
      %s173 = sphi 0, %s170
      %s174 = sphi 0, %s173
      %s190 = sphi 0, %s174
    $region4: #{fbank_aug.1} parent=1 // loop_header_branch
      %17 = sbr.rel (%p15) target = $region8
    $region5: #{fbank_aug.1} parent=1 // loop_body
      %s19 = ssub.s32 %s14, 1
      %s20 = ssub.s32 %s14, 2
      %s27 = sadd.s32 1, %s22
      %p28 = scmp.ge.s32.totalorder %s27, 1
      %s29 = scalar_select %p28, 0, %s27
      %s30 = sadd.s32 1, %s21
      %s31 = scalar_select %p28, %s30, %s21
      %p32 = scmp.ge.s32.totalorder %s31, 2
      %s33 = scalar_select %p32, 0, %s31
      %s34 = ssub.s32 %s21, %s33
      %p35 = scmp.eq.s32.totalorder %s34, 0
      %s37 = sadd.s32 %s36, 1
      %s38 = scalar_select %p35, %s36, %s37
      %p41 = pneg %p35
      %p42 = scmp.eq.s32.totalorder %s14, 1
      %p43 = por %p41, %p42
      %p44 = scmp.ne.s32.totalorder %s36, %s39
      %p45 = scmp.eq.s32.totalorder %s14, 0
      %p46 = por %p44, %p45
      %p47 = scmp.ne.s32.totalorder %s36, %s39
      %p48 = scmp.eq.s32.totalorder %s19, 1
      %p49 = por %p47, %p48
      %p50 = scmp.ne.s32.totalorder %s39, %s40
      %p51 = scmp.eq.s32.totalorder %s19, 0
      %p52 = por %p50, %p51
      %p53 = scmp.ne.s32.totalorder %s39, %s40
      %p54 = scmp.eq.s32.totalorder %s20, 1
      %p55 = por %p53, %p54
      %p57 = scmp.ne.s32.totalorder %s40, %s56
      %p58 = scmp.eq.s32.totalorder %s20, 0
      %p59 = por %p57, %p58
      %s60 = ssub.s32 %s21, %s33
      %p61 = scmp.eq.s32.totalorder %s60, 0
      %s63 = sadd.s32 %s62, 1
      %s64 = scalar_select %p61, %s62, %s63
      %p67 = pneg %p61
      %p68 = scmp.eq.s32.totalorder %s14, 1
      %p69 = por %p67, %p68
      %p70 = scmp.ne.s32.totalorder %s62, %s65
      %p71 = scmp.eq.s32.totalorder %s14, 0
      %p72 = por %p70, %p71
      %p73 = scmp.ne.s32.totalorder %s62, %s65
      %p74 = scmp.eq.s32.totalorder %s19, 1
      %p75 = por %p73, %p74
      %p76 = scmp.ne.s32.totalorder %s65, %s66
      %p77 = scmp.eq.s32.totalorder %s19, 0
      %p78 = por %p76, %p77
      %p79 = scmp.ne.s32.totalorder %s65, %s66
      %p80 = scmp.eq.s32.totalorder %s20, 1
      %p81 = por %p79, %p80
      %p83 = scmp.ne.s32.totalorder %s66, %s82
      %p84 = scmp.eq.s32.totalorder %s20, 0
      %p85 = por %p83, %p84
      %s86 = ssub.s32 %s21, %s33
      %p87 = scmp.eq.s32.totalorder %s86, 0
      %s89 = sadd.s32 %s88, 1
      %s90 = scalar_select %p87, %s88, %s89
      %p93 = pneg %p87
      %p94 = scmp.eq.s32.totalorder %s14, 1
      %p95 = por %p93, %p94
      %p96 = scmp.ne.s32.totalorder %s88, %s91
      %p97 = scmp.eq.s32.totalorder %s14, 0
      %p98 = por %p96, %p97
      %p99 = scmp.ne.s32.totalorder %s88, %s91
      %p100 = scmp.eq.s32.totalorder %s19, 1
      %p101 = por %p99, %p100
      %p102 = scmp.ne.s32.totalorder %s91, %s92
      %p103 = scmp.eq.s32.totalorder %s19, 0
      %p104 = por %p102, %p103
      %p105 = scmp.ne.s32.totalorder %s91, %s92
      %p106 = scmp.eq.s32.totalorder %s20, 1
      %p107 = por %p105, %p106
      %p109 = scmp.ne.s32.totalorder %s92, %s108
      %p110 = scmp.eq.s32.totalorder %s20, 0
      %p111 = por %p109, %p110
      %s112 = ssub.s32 %s21, %s33
      %p113 = scmp.eq.s32.totalorder %s112, 0
      %s115 = sadd.s32 %s114, 1
      %s116 = scalar_select %p113, %s114, %s115
      %p119 = pneg %p113
      %p120 = scmp.eq.s32.totalorder %s14, 1
      %p121 = por %p119, %p120
      %p122 = scmp.ne.s32.totalorder %s114, %s117
      %p123 = scmp.eq.s32.totalorder %s14, 0
      %p124 = por %p122, %p123
      %p125 = scmp.ne.s32.totalorder %s114, %s117
      %p126 = scmp.eq.s32.totalorder %s19, 1
      %p127 = por %p125, %p126
      %p128 = scmp.ne.s32.totalorder %s117, %s118
      %p129 = scmp.eq.s32.totalorder %s19, 0
      %p130 = por %p128, %p129
      %p131 = scmp.ne.s32.totalorder %s117, %s118
      %p132 = scmp.eq.s32.totalorder %s20, 1
      %p133 = por %p131, %p132
      %p135 = scmp.ne.s32.totalorder %s118, %s134
      %p136 = scmp.eq.s32.totalorder %s20, 0
      %p137 = por %p135, %p136
      %s138 = ssub.s32 %s21, %s33
      %s139 = ssub.s32 %s22, %s29
      %s140 = sor.u32 %s138, %s139
      %p141 = scmp.eq.s32.totalorder %s140, 0
      %s143 = sadd.s32 %s142, 1
      %s144 = scalar_select %p141, %s142, %s143
      %p147 = pneg %p141
      %p148 = scmp.eq.s32.totalorder %s14, 1
      %p149 = por %p147, %p148
      %p150 = scmp.ne.s32.totalorder %s142, %s145
      %p151 = scmp.eq.s32.totalorder %s14, 0
      %p152 = por %p150, %p151
      %p153 = scmp.ne.s32.totalorder %s142, %s145
      %p154 = scmp.eq.s32.totalorder %s19, 1
      %p155 = por %p153, %p154
      %p156 = scmp.ne.s32.totalorder %s145, %s146
      %p157 = scmp.eq.s32.totalorder %s19, 0
      %p158 = por %p156, %p157
      %p159 = scmp.ne.s32.totalorder %s145, %s146
      %p160 = scmp.eq.s32.totalorder %s20, 1
      %p161 = por %p159, %p160
      %p163 = scmp.ne.s32.totalorder %s146, %s162
      %p164 = scmp.eq.s32.totalorder %s20, 0
      %p165 = por %p163, %p164
      %s166 = ssub.s32 %s21, %s33
      %s167 = ssub.s32 %s22, %s29
      %s168 = sor.u32 %s166, %s167
      %p169 = scmp.eq.s32.totalorder %s168, 0
      %s171 = sadd.s32 %s170, 1
      %s172 = scalar_select %p169, %s170, %s171
      %p175 = pneg %p169
      %p176 = scmp.eq.s32.totalorder %s14, 1
      %p177 = por %p175, %p176
      %p178 = scmp.ne.s32.totalorder %s170, %s173
      %p179 = scmp.eq.s32.totalorder %s14, 0
      %p180 = por %p178, %p179
      %p181 = scmp.ne.s32.totalorder %s170, %s173
      %p182 = scmp.eq.s32.totalorder %s19, 1
      %p183 = por %p181, %p182
      %p184 = scmp.ne.s32.totalorder %s173, %s174
      %p185 = scmp.eq.s32.totalorder %s19, 0
      %p186 = por %p184, %p185
      %p187 = scmp.ne.s32.totalorder %s173, %s174
      %p188 = scmp.eq.s32.totalorder %s20, 1
      %p189 = por %p187, %p188
      %p191 = scmp.ne.s32.totalorder %s174, %s190
      %p192 = scmp.eq.s32.totalorder %s20, 0
      %p193 = por %p191, %p192
      %p194 = scmp.le.s32.totalorder 1, %s14
      %p195 = scmp.lt.s32.totalorder %s14, 3
      %p196 = pnand %p194, %p195
      %p197 = pneg %p196
      // Predicated region
      $region9: #{fbank_aug.1} parent=5 // pred_check
        _
      $region10: #{fbank_aug.1} parent=5 // pred_check_branch
        %199 = sbr.rel (%p196) target = $region12
      $region11: #{fbank_aug.1} parent=5 // pred_region
        %s200 = ssub.s32 %s14, 1
      $region12: #{fbank_aug.1} parent=5 // pred_fallthru
        _
      %p201 = scmp.lt.s32.totalorder %s14, 2
      // Predicated region
      $region13: #{fbank_aug.1} parent=5 // pred_check
        %p202 = pneg %p201
      $region14: #{fbank_aug.1} parent=5 // pred_check_branch
        %204 = sbr.rel (%p202) target = $region16
      $region15: #{fbank_aug.1} parent=5 // pred_region
        // Predicated region
        $region17: #{fbank_aug.1} parent=15 // pred_check
          %p205 = pneg %p46
        $region18: #{fbank_aug.1} parent=15 // pred_check_branch
          %207 = sbr.rel (%p205) target = $region20
        $region19: #{fbank_aug.1} parent=15 // pred_region
          %p208 = scmp.lt.s32.totalorder %s21, 1
          %s209 = scalar_select %p208, %s21, 1
          %s210 = scalar_lea.vmem %s0, %s209
        $region20: #{fbank_aug.1} parent=15 // pred_fallthru
          _
        // Predicated region
        $region21: #{fbank_aug.1} parent=15 // pred_check
          %p211 = pneg %p72
        $region22: #{fbank_aug.1} parent=15 // pred_check_branch
          %213 = sbr.rel (%p211) target = $region24
        $region23: #{fbank_aug.1} parent=15 // pred_region
          %p214 = scmp.lt.s32.totalorder %s21, 1
          %s215 = scalar_select %p214, %s21, 1
          %s216 = scalar_lea.vmem %s1, %s215
        $region24: #{fbank_aug.1} parent=15 // pred_fallthru
          _
        // Predicated region
        $region25: #{fbank_aug.1} parent=15 // pred_check
          %p217 = pneg %p98
        $region26: #{fbank_aug.1} parent=15 // pred_check_branch
          %219 = sbr.rel (%p217) target = $region28
        $region27: #{fbank_aug.1} parent=15 // pred_region
          %p220 = scmp.lt.s32.totalorder %s21, 1
          %s221 = scalar_select %p220, %s21, 1
          %s222 = scalar_lea.vmem %s2, %s221
        $region28: #{fbank_aug.1} parent=15 // pred_fallthru
          _
        // Predicated region
        $region29: #{fbank_aug.1} parent=15 // pred_check
          %p223 = pneg %p124
        $region30: #{fbank_aug.1} parent=15 // pred_check_branch
          %225 = sbr.rel (%p223) target = $region32
        $region31: #{fbank_aug.1} parent=15 // pred_region
          %p226 = scmp.lt.s32.totalorder %s21, 1
          %s227 = scalar_select %p226, %s21, 1
          %s228 = scalar_lea.vmem %s3, %s227
        $region32: #{fbank_aug.1} parent=15 // pred_fallthru
          _
        // Predicated region
        $region33: #{fbank_aug.1} parent=15 // pred_check
          %p229 = pneg %p152
        $region34: #{fbank_aug.1} parent=15 // pred_check_branch
          %231 = sbr.rel (%p229) target = $region36
        $region35: #{fbank_aug.1} parent=15 // pred_region
          %p232 = scmp.lt.s32.totalorder %s21, 1
          %s233 = scalar_select %p232, %s21, 1
          %p234 = scmp.lt.s32.totalorder %s22, 0
          %s235 = scalar_select %p234, %s22, 0
          %s236 = smul.addr %s233, 2
          %s237 = sadd.s32 %s235, %s236
          %s238 = smul.addr %s237, 8
          %s239 = scalar_lea.vmem %s4, %s238
        $region36: #{fbank_aug.1} parent=15 // pred_fallthru
          _
      $region16: #{fbank_aug.1} parent=5 // pred_fallthru
        _
      %p240 = scmp.le.s32.totalorder 1, %s14
      %p241 = scmp.lt.s32.totalorder %s14, 3
      %p242 = pnand %p240, %p241
      %p243 = pneg %p242
      // Predicated region
      $region37: #{fbank_aug.1} parent=5 // pred_check
        _
      $region38: #{fbank_aug.1} parent=5 // pred_check_branch
        %245 = sbr.rel (%p242) target = $region40
      $region39: #{fbank_aug.1} parent=5 // pred_region
        %s246 = ssub.s32 %s14, 1
        %p247 = scmp.lt.s32.totalorder %s23, 1
        %s248 = scalar_select %p247, %s23, 1
        %s249 = scalar_lea.vmem %s0, %s248
        %p250 = pneg %p52
        %p251 = pneg %p49
        %p252 = scmp.lt.s32.totalorder %s23, 1
        %s253 = scalar_select %p252, %s23, 1
        %s254 = scalar_lea.vmem %s1, %s253
        %p255 = pneg %p78
        %p256 = pneg %p75
        %p257 = scmp.lt.s32.totalorder %s23, 1
        %s258 = scalar_select %p257, %s23, 1
        %s259 = scalar_lea.vmem %s2, %s258
        %p260 = pneg %p104
        %p261 = pneg %p101
        %p262 = scmp.lt.s32.totalorder %s23, 1
        %s263 = scalar_select %p262, %s23, 1
        %s264 = scalar_lea.vmem %s3, %s263
        %p265 = pneg %p130
        %p266 = pneg %p127
        %p267 = scmp.lt.s32.totalorder %s23, 1
        %s268 = scalar_select %p267, %s23, 1
        %p269 = scmp.lt.s32.totalorder %s24, 0
        %s270 = scalar_select %p269, %s24, 0
        %s271 = smul.addr %s268, 2
        %s272 = sadd.s32 %s270, %s271
        %s273 = smul.addr %s272, 8
        %s274 = scalar_lea.vmem %s4, %s273
        %p275 = pneg %p158
        %p276 = pneg %p155
        %p277 = pneg %p186
        %p278 = pneg %p183
        %s279 = sand.u32 %s173, 1
        %s280 = scalar_lea.sflag [#allocation3], %s279
        %s281 = sand.u32 %s173, 1
        %s282 = smul.addr %s281, 16
        %s283 = scalar_lea.vmem [#allocation2], %s282
        %p284 = scmp.lt.s32.totalorder %s23, 1
        %s285 = scalar_select %p284, %s23, 1
        %s286 = scalar_lea.vmem %s0, %s285
        %p287 = scmp.lt.s32.totalorder %s23, 1
        %s288 = scalar_select %p287, %s23, 1
        %s289 = scalar_lea.vmem %s1, %s288
        %p290 = scmp.lt.s32.totalorder %s23, 1
        %s291 = scalar_select %p290, %s23, 1
        %s292 = scalar_lea.vmem %s2, %s291
        %p293 = scmp.lt.s32.totalorder %s23, 1
        %s294 = scalar_select %p293, %s23, 1
        %s295 = scalar_lea.vmem %s3, %s294
        %p296 = scmp.lt.s32.totalorder %s23, 1
        %s297 = scalar_select %p296, %s23, 1
        %p298 = scmp.lt.s32.totalorder %s24, 0
        %s299 = scalar_select %p298, %s24, 0
        %s300 = smul.addr %s297, 2
        %s301 = sadd.s32 %s299, %s300
        %s302 = smul.addr %s301, 8
        %s303 = scalar_lea.vmem %s4, %s302
        %s304 = smul.u32 %s24, 32
        %v305 = vlaneseq
        %v306 = vand.u32 %v305, 127
        %v307 = vlaneseq
        %v308 = vshrl.u32 %v307, 7
        %v309 = vadd.s32 %v308, 8
        %v310 = vld [vmem:[%s286] sm:$0x1]
        %v311 = vstv %s304
        %v312 = vsub.s32 %v310, %v311
        %v313 = vld [vmem:[%s292] sm:$0x1]
        %314 = vset.pattern.permute.xlu0 0
        %315 = vperm.xlu0 %314, %v312
        %v316 = vpop.permute.xlu0 %315
        %v317 = vlaneseq
        %v318 = vshrl.u32 %v317, 7
        %v319 = vsub.s32 0, %v318
        %v320 = vrot.slane %v316, %v319
        %vm321 = vcmp.ge.s32.totalorder %v306, %v320
        %v322 = vld [vmem:[%s289] sm:$0x1]
        %v323 = vadd.s32 %v312, %v322
        %324 = vset.pattern.permute.xlu0 0
        %325 = vperm.xlu0 %324, %v323
        %v326 = vpop.permute.xlu0 %325
        %v327 = vlaneseq
        %v328 = vshrl.u32 %v327, 7
        %v329 = vsub.s32 0, %v328
        %v330 = vrot.slane %v326, %v329
        %vm331 = vcmp.lt.s32.totalorder %v306, %v330
        %vm332 = vmand %vm321, %vm331
        %v333 = vlaneseq
        %v334 = vshrl.u32 %v333, 7
        %v335 = vsub.s32 0, %v334
        %v336 = vrot.slane %v313, %v335
        %vm337 = vcmp.ge.s32.totalorder %v308, %v336
        %vm338 = vcmp.ge.s32.totalorder %v309, %v336
        %v339 = vld [vmem:[%s295] sm:$0x1]
        %v340 = vadd.s32 %v313, %v339
        %v341 = vlaneseq
        %v342 = vshrl.u32 %v341, 7
        %v343 = vsub.s32 0, %v342
        %v344 = vrot.slane %v340, %v343
        %vm345 = vcmp.lt.s32.totalorder %v308, %v344
        %vm346 = vcmp.lt.s32.totalorder %v309, %v344
        %vm347 = vmand %vm337, %vm345
        %vm348 = vmand %vm338, %vm346
        %v349 = vsel %vm332, 1, 0
        %vm350 = vcmp.eq.s32.totalorder %v349, 1
        %v351 = vsel %vm347, 1, 0
        %v352 = vsel %vm348, 1, 0
        %353 = vset.pattern.permute.xlu0 0
        %354 = vperm.xlu0 %353, %v351
        %v355 = vpop.permute.xlu0 %354
        %356 = vset.pattern.permute.xlu0 0
        %357 = vperm.xlu0 %356, %v352
        %v358 = vpop.permute.xlu0 %357
        %vm359 = vcmp.eq.s32.totalorder %v355, 1
        %vm360 = vcmp.eq.s32.totalorder %v358, 1
        %vm361 = vmor %vm350, %vm359
        %vm362 = vmor %vm350, %vm360
        %v363 = vld [vmem:[%s303] sm:$0xff]
        %v364 = vld [vmem:[%s303 + $0x8] sm:$0xff]
        %v365 = vsel %vm361, 0.0, %v363
        %v366 = vsel %vm362, 0.0, %v364
        %vm367 = vcmask 261120
        %368 = vst.msk [vmem:[%s283] sm:$0xff] %vm367, %v365
        %369 = vst.msk [vmem:[%s283 + $0x8] sm:$0xff] %vm367, %v366
        %s370 = sand.u32 %s173, 1
        %s371 = scalar_lea.sflag [#allocation3], %s370
        %s372 = sand.u32 %s173, 1
        %s373 = smul.addr %s372, 16
        %s374 = scalar_lea.vmem [#allocation2], %s373
        // Predicated region
        $region41: #{fbank_aug.1} parent=39 // pred_check
          %p375 = pneg %p183
        $region42: #{fbank_aug.1} parent=39 // pred_check_branch
          %377 = sbr.rel (%p375) target = $region44
        $region43: #{fbank_aug.1} parent=39 // pred_region
          %s379 = ssub.s32 256, 256
          %380 = vsyncadd %s371, %s379
          %s381 = smul.addr %s23, 2
          %s382 = sadd.s32 %s24, %s381
          %s383 = smul.addr %s382, 128
          %s384 = scalar_lea.hbm %s5, %s383
          %s385 = sshll.u32 %s374, 4
          %s386 = int_to_ptr.vmem [resolvable:$true] %s385
          %391 = dma.vmem_to_hbm [thread:$0]  %s386, 256, %s384, %s371, 128, 128, 8
        $region44: #{fbank_aug.1} parent=39 // pred_fallthru
          _
      $region40: #{fbank_aug.1} parent=5 // pred_fallthru
        _
      %p392 = scmp.le.s32.totalorder 2, %s14
      // Predicated region
      $region45: #{fbank_aug.1} parent=5 // pred_check
        %p393 = pneg %p392
      $region46: #{fbank_aug.1} parent=5 // pred_check_branch
        %395 = sbr.rel (%p393) target = $region48
      $region47: #{fbank_aug.1} parent=5 // pred_region
        %s396 = ssub.s32 %s14, 2
        // Predicated region
        $region49: #{fbank_aug.1} parent=47 // pred_check
          %p397 = pneg %p189
        $region50: #{fbank_aug.1} parent=47 // pred_check_branch
          %399 = sbr.rel (%p397) target = $region52
        $region51: #{fbank_aug.1} parent=47 // pred_region
          %s400 = sand.u32 %s174, 1
          %s401 = scalar_lea.sflag [#allocation3], %s400
          %s402 = sand.u32 %s174, 1
          %s403 = smul.addr %s402, 16
          %s404 = scalar_lea.vmem [#allocation2], %s403
          %405 = dma.done %s401, 256
        $region52: #{fbank_aug.1} parent=47 // pred_fallthru
          _
      $region48: #{fbank_aug.1} parent=5 // pred_fallthru
        _
    $region6: #{fbank_aug.1} parent=1 // loop_footer
      %s18 = sadd.s32 1, %s14
    $region7: #{fbank_aug.1} parent=1 // loop_footer_branch
      %13 = sbr.rel target = $region3
    $region8: #{fbank_aug.1} parent=1 // loop_exit
      _
    %406 = vsyncpa [#allocation3], 1
    %s407 = scalar_lea.sflag [#allocation3], 1
    %408 = vsyncpa %s407, 1

</llo_original>
